<compile_context>
chip_gen: v5e
topology: v5e:2x2
jax: 0.10.0
libtpu: 0.0.40
codegen_flags: <defaults>
</compile_context>

<pallas_src>
import jax
import jax.numpy as jnp
from jax.experimental import pallas as pl
from jax.experimental.pallas import tpu as pltpu


def _sigmoid_beta_kernel(half_alpha_ref, x_ref, o_ref):
    # half_alpha_ref is a (1, 1) f32 scalar in SMEM; x_ref/o_ref are VMEM tiles.
    ha = half_alpha_ref[0, 0]
    xf = x_ref[...].astype(jnp.float32)
    # sigmoid(a*x) == 0.5 * tanh(0.5*a*x) + 0.5  -> one EUP op per vreg.
    o_ref[...] = (0.5 * jnp.tanh(ha * xf) + 0.5).astype(o_ref.dtype)


def _choose_cols(n):
    """Largest lane-dense column count (multiple of 128) dividing n, else None."""
    for c in (1024, 512, 256, 128):
        if n % c == 0:
            return c
    return None


def sigmoid_beta_forward(x, alpha):
    """y = sigmoid(alpha * x); identity if alpha == 0.0.

    NOTE: alpha mirrors a non-trainable nn.Parameter, so the zero check is a
    static (host-side) branch; alpha must be a concrete Python/NumPy scalar.
    """
    if float(alpha) == 0.0:
        return x

    orig_shape = x.shape
    n = x.size
    itemsize = jnp.dtype(x.dtype).itemsize

    # ---- choose a lane-dense 2D factoring, avoiding a padding copy if possible.
    cols = _choose_cols(n)
    pad = 0
    x_flat = x.reshape(-1)
    if cols is None:
        # Rare fallback: x.size not a multiple of 128 -> pad the flat tail.
        cols = 128
        pad = (-n) % cols
        x_flat = jnp.pad(x_flat, (0, pad))
    rows = x_flat.size // cols
    x2d = x_flat.reshape(rows, cols)

    # ---- dtype-aware row tiling (sublane packing: 8 f32 / 16 bf16 / 32 int8).
    sublane = max(8, 32 // itemsize)
    max_block_bytes = 2 * 1024 * 1024  # ~2 MiB per block buffer (v7x-safe)
    tile_rows = max_block_bytes // (cols * itemsize)
    tile_rows = max(sublane, (tile_rows // sublane) * sublane)
    if tile_rows >= rows:
        tile_rows = rows  # full-extent block: always legal, and small enough
    grid = (pl.cdiv(rows, tile_rows),)

    half_alpha = jnp.asarray(0.5 * float(alpha), dtype=jnp.float32).reshape(1, 1)

    out2d = pl.pallas_call(
        _sigmoid_beta_kernel,
        out_shape=jax.ShapeDtypeStruct((rows, cols), x.dtype),
        grid_spec=pltpu.PrefetchScalarGridSpec(
            num_scalar_prefetch=0,
            grid=grid,
            in_specs=[
                pl.BlockSpec(memory_space=pltpu.SMEM),               # 0.5*alpha scalar
                pl.BlockSpec((tile_rows, cols), lambda i: (i, 0)),   # x tile
            ],
            out_specs=pl.BlockSpec((tile_rows, cols), lambda i: (i, 0)),
        ),
        compiler_params=pltpu.CompilerParams(
            dimension_semantics=("parallel",),
        ),
    )(half_alpha, x2d)

    out_flat = out2d.reshape(-1)
    if pad:
        out_flat = out_flat[:n]
    return out_flat.reshape(orig_shape)


if __name__ == "__main__":
    key = jax.random.PRNGKey(0)
    # Small NCHW input consistent with typical use: (batch=2, channels=4, 16x16)
    x = jax.random.normal(key, (2, 4, 16, 16), dtype=jnp.float32)

    alpha = 1.0  # deterministic parameter init, matching nn.Parameter(torch.tensor(1.0))

    y = sigmoid_beta_forward(x, alpha)
    y = jax.block_until_ready(y)

    # sanity check against plain JAX reference
    y_ref = jax.nn.sigmoid(alpha * x)
    assert jnp.allclose(y, y_ref, atol=1e-6), "mismatch vs reference"

    # also exercise the alpha == 0 identity branch
    y0 = sigmoid_beta_forward(x, 0.0)
    assert jnp.allclose(y0, x), "alpha==0 identity branch mismatch"

    print("KERNEL_OK")
</pallas_src>

<mosaic_0001>
module attributes {stable_mosaic.version = 11 : i64} {
  func.func @_sigmoid_beta_kernel(%arg0: i32, %arg1: memref<1x1xf32, #tpu.memory_space<smem>>, %arg2: memref<2x1024xf32, #tpu.memory_space<vmem>>, %arg3: memref<2x1024xf32, #tpu.memory_space<vmem>>) attributes {dimension_semantics = [#tpu.dimension_semantics<parallel>], iteration_bounds = array<i64: 1>, scalar_prefetch = 0 : i64, scratch_operands = 0 : i64, tpu.core_type = #tpu.core_type<tc>, window_params = [{transform_indices = @transform_0, window_bounds = array<i64: 1, 1>}, {transform_indices = @transform_1, window_bounds = array<i64: 2, 1024>}, {transform_indices = @transform_2, window_bounds = array<i64: 2, 1024>}]} {
    %c0 = arith.constant 0 : index
    %c0_0 = arith.constant 0 : index
    %0 = memref.load %arg1[%c0, %c0_0] : memref<1x1xf32, #tpu.memory_space<smem>>
    %c0_1 = arith.constant 0 : index
    %c0_2 = arith.constant 0 : index
    %1 = vector.load %arg2[%c0_1, %c0_2] : memref<2x1024xf32, #tpu.memory_space<vmem>>, vector<2x1024xf32>
    %2 = vector.broadcast %0 : f32 to vector<2x1024xf32>
    %3 = arith.mulf %2, %1 : vector<2x1024xf32>
    %4 = math.tanh %3 : vector<2x1024xf32>
    %cst = arith.constant 5.000000e-01 : f32
    %5 = vector.broadcast %cst : f32 to vector<2x1024xf32>
    %6 = arith.mulf %5, %4 : vector<2x1024xf32>
    %cst_3 = arith.constant 5.000000e-01 : f32
    %7 = vector.broadcast %cst_3 : f32 to vector<2x1024xf32>
    %8 = arith.addf %6, %7 : vector<2x1024xf32>
    %c0_4 = arith.constant 0 : index
    %c0_5 = arith.constant 0 : index
    %9 = vector.load %arg3[%c0_4, %c0_5] : memref<2x1024xf32, #tpu.memory_space<vmem>>, vector<2x1024xf32>
    tpu.vector_store %arg3[%c0_4, %c0_5], %8 {strides = array<i32>} : memref<2x1024xf32, #tpu.memory_space<vmem>>, vector<2x1024xf32>,
    return
  }
  func.func @transform_0(%arg0: i32) -> (i32, i32) {
    %c0_i32 = arith.constant 0 : i32
    %c0_i32_0 = arith.constant 0 : i32
    %c0_i32_1 = arith.constant 0 : i32
    return %c0_i32, %c0_i32_0 : i32, i32
  }
  func.func @transform_1(%arg0: i32) -> (i32, i32) {
    %c0_i32 = arith.constant 0 : i32
    %c0_i32_0 = arith.constant 0 : i32
    return %arg0, %c0_i32 : i32, i32
  }
  func.func @transform_2(%arg0: i32) -> (i32, i32) {
    %c0_i32 = arith.constant 0 : i32
    %c0_i32_0 = arith.constant 0 : i32
    return %arg0, %c0_i32 : i32, i32
  }
}

</mosaic_0001>

<llo_original>
// kernel: tpu_custom_call.1
$region0: #{tpu_custom_call.1}
  #allocation0 [shape = 'u32[]', space=smem, size = 0x4, offset = 0x4, fixed_abs, tag = 'smem constant byte address 0x4 - core index']
  #allocation1 [shape = 'u32[72,128]{1,0:T(1,128)}', space=vmem, size = 0x9000, scoped, tag = 'internal scratch']
  #allocation2 [shape = 'f32[1,1]{1,0:T(1,128)S(6)}', space=smem, size = 0x200, scoped, tag = 'scoped memory for tpu_custom_call.1']
  %s0 = inlined_call_operand.<no memory space> [shape: f32[1,1], index: 0, kind: input, shape index: {}]
  %s1 = inlined_call_operand.hbm [shape: f32[2,1024], index: 1, kind: input, shape index: {}]
  %s2 = inlined_call_operand.hbm [shape: f32[2,1024], index: 2, kind: output, shape index: {}]
  %s3 = sld [smem:[#allocation0]]
  $region22: #{tpu_custom_call.1} parent=0
    _
  %s5 = ssub.s32 1, %s3
  %s6 = scalar_select 0, %s5, %s3
  %7 = sst [smem:[#allocation2]] %s0
  $region1: #{tpu_custom_call.1} parent=0
    #allocation3 [shape = 'u8[8192]{0}', space=vmem, size = 0x2000, scoped, tag = 'input window, operand 1, single buffered']
    #allocation4 [shape = 's32[1]{0}', space=sflag, size = 0x4, scoped, tag = 'scoped memory for tpu_custom_call.1']
    #allocation5 [shape = 's32[1]{0}', space=sflag, size = 0x4, scoped, tag = 'scoped memory for tpu_custom_call.1']
    #allocation6 [shape = 'u8[8192]{0}', space=vmem, size = 0x2000, scoped, tag = 'output window, operand 0, single buffered']
    %8 = vsyncpa [#allocation4], 0
    %9 = vsyncpa [#allocation5], 0
    // Predicated region
    $region2: #{tpu_custom_call.1} parent=1 // pred_check
      _
    $region3: #{tpu_custom_call.1} parent=1 // pred_check_branch
      %11 = sbr.rel (0) target = $region5
    $region4: #{tpu_custom_call.1} parent=1 // pred_region
      _
    $region5: #{tpu_custom_call.1} parent=1 // pred_fallthru
      _
    // Predicated region
    $region6: #{tpu_custom_call.1} parent=1 // pred_check
      _
    $region7: #{tpu_custom_call.1} parent=1 // pred_check_branch
      %13 = sbr.rel (0) target = $region9
    $region8: #{tpu_custom_call.1} parent=1 // pred_region
      %15 = vsyncadd [#allocation4], 0
      %s17 = sshll.u32 %s1, 4
      %s18 = int_to_ptr.hbm [resolvable:$true] %s17
      %s19 = sshll.u32 [#allocation3], 4
      %s20 = int_to_ptr.vmem [resolvable:$true] %s19
      %22 = dma.hbm_to_vmem [thread:$0]  %s18, 256, %s20, [#allocation4]
    $region9: #{tpu_custom_call.1} parent=1 // pred_fallthru
      _
    // Predicated region
    $region10: #{tpu_custom_call.1} parent=1 // pred_check
      _
    $region11: #{tpu_custom_call.1} parent=1 // pred_check_branch
      %24 = sbr.rel (0) target = $region13
    $region12: #{tpu_custom_call.1} parent=1 // pred_region
      %26 = dma.done [#allocation4], 256
    $region13: #{tpu_custom_call.1} parent=1 // pred_fallthru
      _
    %s27 = sld [smem:[#allocation2]]
    %v28 = vld [vmem:[#allocation3] sm:$0xff]
    %v29 = vld [vmem:[#allocation3 + $0x8] sm:$0xff]
    %v30 = vstv %s27
    %v31 = vmul.f32 %v30, %v28
    %v32 = vmul.f32 %v30, %v29
    %v33 = vtanh.pop %v31
    %v34 = vtanh.pop %v32
    %v35 = vmul.f32 %v33, 0.5
    %v36 = vmul.f32 %v34, 0.5
    %v37 = vadd.f32 %v35, 0.5
    %v38 = vadd.f32 %v36, 0.5
    %39 = vst [vmem:[#allocation6] sm:$0xff] %v37
    %40 = vst [vmem:[#allocation6 + $0x8] sm:$0xff] %v38
    // Predicated region
    $region14: #{tpu_custom_call.1} parent=1 // pred_check
      _
    $region15: #{tpu_custom_call.1} parent=1 // pred_check_branch
      %42 = sbr.rel (0) target = $region17
    $region16: #{tpu_custom_call.1} parent=1 // pred_region
      %44 = vsyncadd [#allocation5], 0
      %s46 = sshll.u32 [#allocation6], 4
      %s47 = int_to_ptr.vmem [resolvable:$true] %s46
      %s48 = sshll.u32 %s2, 4
      %s49 = int_to_ptr.hbm [resolvable:$true] %s48
      %51 = dma.vmem_to_hbm [thread:$0]  %s47, 256, %s49, [#allocation5]
    $region17: #{tpu_custom_call.1} parent=1 // pred_fallthru
      _
    // Predicated region
    $region18: #{tpu_custom_call.1} parent=1 // pred_check
      _
    $region19: #{tpu_custom_call.1} parent=1 // pred_check_branch
      %53 = sbr.rel (0) target = $region21
    $region20: #{tpu_custom_call.1} parent=1 // pred_region
      %55 = dma.done [#allocation5], 256
    $region21: #{tpu_custom_call.1} parent=1 // pred_fallthru
      _
    %56 = vsyncpa [#allocation4], 1
    %57 = vsyncpa [#allocation5], 1

</llo_original>
